<compile_context>
chip_gen: v5e
topology: v5e:2x2
jax: 0.10.0
libtpu: 0.0.40
codegen_flags: <defaults>
</compile_context>

<pallas_src>
import numpy as np
import jax
import jax.numpy as jnp
from jax.experimental import pallas as pl
from jax.experimental.pallas import tpu as pltpu

# ---------------- module-consistent configuration ---------------------------
B = 2            # batch
C = 32           # in_planes (ratio=16 -> bottleneck C//16 = 2)
RATIO = 16
C_R = C // RATIO
H = 16
W = 16
HW = H * W

_VMEM = pl.BlockSpec(memory_space=pltpu.MemorySpace.VMEM)


# ---------------- shared kernel math (all VPU/XLU, exact f32) ----------------
def _attention(x, w1, w2t):
    """x: [B, C, HW] lane-dense, w1: [C_R, C], w2t: [C_R, C] -> att [B, C]."""
    mx = jnp.max(x, axis=-1)                                           # AdaptiveMaxPool2d(1) -> [B, C]
    # fc1 (1x1 conv, no bias): h[b, r] = sum_c mx[b, c] * w1[r, c]  (lane reduce)
    h = jnp.sum(mx[:, None, :] * w1[None, :, :], axis=-1)              # [B, C_R]
    h = jnp.maximum(h, 0.0)                                            # ReLU
    # fc2 (1x1 conv, no bias): att[b, c] = sum_r h[b, r] * w2t[r, c]  (sublane reduce)
    att = jax.nn.sigmoid(jnp.sum(h[:, :, None] * w2t[None, :, :], axis=1))  # [B, C]
    return att


def _ca_kernel(x_ref, w1_ref, w2t_ref, att_ref):
    att = _attention(x_ref[...], w1_ref[...], w2t_ref[...])
    att_ref[...] = att.astype(att_ref.dtype)


def _ca_fused_kernel(x_ref, w1_ref, w2t_ref, att_ref, xs_ref):
    x = x_ref[...]
    att = _attention(x, w1_ref[...], w2t_ref[...])
    att_ref[...] = att.astype(att_ref.dtype)
    # x is already in VMEM: apply the attention here, no second HBM read of x.
    xs_ref[...] = (x * att[:, :, None]).astype(xs_ref.dtype)


# ---------------- one-time weight preparation (hoisted out of call path) -----
def prepare_channel_attention_weights(w_fc1, w_fc2):
    """PyTorch Conv2d weights [C_R, C, 1, 1] / [C, C_R, 1, 1] -> lane-dense [C_R, C] pair."""
    c_r, c = int(w_fc1.shape[0]), int(w_fc1.shape[1])
    w1 = jnp.asarray(w_fc1).reshape(c_r, c)             # fc1 weight, [C_R, C]
    w2t = jnp.asarray(w_fc2).reshape(c, c_r).T          # fc2 weight transposed, [C_R, C]
    return w1, w2t


# ---------------- wrappers ----------------------------------------------------
@jax.jit
def channel_attention_pallas(x, w1, w2t):
    """Exact nn.Module semantics: returns the attention map [B, C, 1, 1]."""
    b, c, h, w = x.shape
    hw = h * w
    c_r = w1.shape[0]
    x_flat = x.reshape(b, c, hw)                         # lane-dense view
    cost = pl.CostEstimate(
        flops=int(b * c * hw + 4 * b * c * c_r),
        transcendentals=int(b * c),
        bytes_accessed=int(4 * (b * c * hw + 2 * c * c_r + b * c)))
    att = pl.pallas_call(
        _ca_kernel,
        out_shape=jax.ShapeDtypeStruct((b, c), jnp.float32),
        in_specs=[_VMEM, _VMEM, _VMEM],
        out_specs=_VMEM,
        cost_estimate=cost,
    )(x_flat, w1, w2t)
    return att.reshape(b, c, 1, 1)                       # matches nn.Module output shape


@jax.jit
def channel_attention_apply_pallas(x, w1, w2t):
    """Fused variant for the enclosing module: returns (att [B,C,1,1], x*att [B,C,H,W])."""
    b, c, h, w = x.shape
    hw = h * w
    c_r = w1.shape[0]
    x_flat = x.reshape(b, c, hw)
    cost = pl.CostEstimate(
        flops=int(2 * b * c * hw + 4 * b * c * c_r),
        transcendentals=int(b * c),
        bytes_accessed=int(4 * (2 * b * c * hw + 2 * c * c_r + b * c)))
    att, xs = pl.pallas_call(
        _ca_fused_kernel,
        out_shape=(jax.ShapeDtypeStruct((b, c), jnp.float32),
                   jax.ShapeDtypeStruct((b, c, hw), x.dtype)),
        in_specs=[_VMEM, _VMEM, _VMEM],
        out_specs=(_VMEM, _VMEM),
        cost_estimate=cost,
    )(x_flat, w1, w2t)
    return att.reshape(b, c, 1, 1), xs.reshape(b, c, h, w)


# ---------------- pure-JAX reference (for self-check) ------------------------
def channel_attention_ref(x, w_fc1, w_fc2):
    mx = jnp.max(x, axis=(2, 3))                              # [B, C]
    w1 = w_fc1.reshape(w_fc1.shape[0], -1)                    # [C_R, C]
    w2 = w_fc2.reshape(w_fc2.shape[0], -1)                    # [C, C_R]
    h = jax.nn.relu(jnp.einsum("rc,bc->br", w1, mx))          # [B, C_R]
    att = jax.nn.sigmoid(jnp.einsum("cr,br->bc", w2, h))      # [B, C]
    return att[:, :, None, None]


if __name__ == "__main__":
    key = jax.random.PRNGKey(0)
    kx, k1, k2 = jax.random.split(key, 3)
    x = jax.random.normal(kx, (B, C, H, W), jnp.float32)
    # PyTorch Conv2d weights: fc1 [C//ratio, C, 1, 1], fc2 [C, C//ratio, 1, 1] (bias=False)
    w_fc1 = 0.1 * jax.random.normal(k1, (C_R, C, 1, 1), jnp.float32)
    w_fc2 = 0.1 * jax.random.normal(k2, (C, C_R, 1, 1), jnp.float32)

    # one-time weight plumbing, outside the per-call path
    w1, w2t = prepare_channel_attention_weights(w_fc1, w_fc2)

    # spec-exact kernel
    att = channel_attention_pallas(x, w1, w2t)
    att = jax.block_until_ready(att)

    # fused kernel (attention + application, single VMEM residency of x)
    att_f, xs_f = channel_attention_apply_pallas(x, w1, w2t)
    att_f, xs_f = jax.block_until_ready((att_f, xs_f))

    ref_att = channel_attention_ref(x, w_fc1, w_fc2)
    ref_xs = x * ref_att

    np.testing.assert_allclose(np.asarray(att), np.asarray(ref_att), atol=1e-6, rtol=1e-5)
    np.testing.assert_allclose(np.asarray(att_f), np.asarray(ref_att), atol=1e-6, rtol=1e-5)
    np.testing.assert_allclose(np.asarray(xs_f), np.asarray(ref_xs), atol=1e-5, rtol=1e-5)
    print("KERNEL_OK")
</pallas_src>

<mosaic_0001>
module attributes {stable_mosaic.version = 11 : i64} {
  func.func @_ca_kernel(%arg0: memref<2x32x256xf32, #tpu.memory_space<vmem>>, %arg1: memref<2x32xf32, #tpu.memory_space<vmem>>, %arg2: memref<2x32xf32, #tpu.memory_space<vmem>>, %arg3: memref<2x32xf32, #tpu.memory_space<vmem>>) attributes {dimension_semantics = [], scalar_prefetch = 0 : i64, scratch_operands = 0 : i64, tpu.core_type = #tpu.core_type<tc>} {
    %c0 = arith.constant 0 : index
    %c0_0 = arith.constant 0 : index
    %c0_1 = arith.constant 0 : index
    %0 = vector.load %arg0[%c0, %c0_0, %c0_1] : memref<2x32x256xf32, #tpu.memory_space<vmem>>, vector<2x32x256xf32>
    %c0_2 = arith.constant 0 : index
    %c0_3 = arith.constant 0 : index
    %1 = vector.load %arg1[%c0_2, %c0_3] : memref<2x32xf32, #tpu.memory_space<vmem>>, vector<2x32xf32>
    %c0_4 = arith.constant 0 : index
    %c0_5 = arith.constant 0 : index
    %2 = vector.load %arg2[%c0_4, %c0_5] : memref<2x32xf32, #tpu.memory_space<vmem>>, vector<2x32xf32>
    %cst = arith.constant dense<0xFF800000> : vector<2x32xf32>
    %3 = vector.multi_reduction <maximumf>, %0, %cst [2] : vector<2x32x256xf32> to vector<2x32xf32>
    %4 = vector.shape_cast %3 : vector<2x32xf32> to vector<2x1x32xf32>
    %5 = vector.shape_cast %1 : vector<2x32xf32> to vector<1x2x32xf32>
    %6 = vector.broadcast %4 : vector<2x1x32xf32> to vector<2x2x32xf32>
    %7 = vector.broadcast %5 : vector<1x2x32xf32> to vector<2x2x32xf32>
    %8 = arith.mulf %6, %7 : vector<2x2x32xf32>
    %cst_6 = arith.constant dense<0.000000e+00> : vector<2x2xf32>
    %9 = vector.multi_reduction <add>, %8, %cst_6 [2] : vector<2x2x32xf32> to vector<2x2xf32>
    %cst_7 = arith.constant 0.000000e+00 : f32
    %10 = vector.broadcast %cst_7 : f32 to vector<2x2xf32>
    %11 = arith.maximumf %9, %10 : vector<2x2xf32>
    %12 = vector.shape_cast %11 : vector<2x2xf32> to vector<2x2x1xf32>
    %13 = vector.shape_cast %2 : vector<2x32xf32> to vector<1x2x32xf32>
    %14 = vector.broadcast %12 : vector<2x2x1xf32> to vector<2x2x32xf32>
    %15 = vector.broadcast %13 : vector<1x2x32xf32> to vector<2x2x32xf32>
    %16 = arith.mulf %14, %15 : vector<2x2x32xf32>
    %cst_8 = arith.constant dense<0.000000e+00> : vector<2x32xf32>
    %17 = vector.multi_reduction <add>, %16, %cst_8 [1] : vector<2x2x32xf32> to vector<2x32xf32>
    %18 = arith.negf %17 : vector<2x32xf32>
    %19 = math.exp %18 : vector<2x32xf32>
    %cst_9 = arith.constant 1.000000e+00 : f32
    %20 = vector.broadcast %cst_9 : f32 to vector<2x32xf32>
    %21 = arith.addf %20, %19 : vector<2x32xf32>
    %22 = arith.divf %20, %21 : vector<2x32xf32>
    %c0_10 = arith.constant 0 : index
    %c0_11 = arith.constant 0 : index
    %23 = vector.load %arg3[%c0_10, %c0_11] : memref<2x32xf32, #tpu.memory_space<vmem>>, vector<2x32xf32>
    tpu.vector_store %arg3[%c0_10, %c0_11], %22 {strides = array<i32>} : memref<2x32xf32, #tpu.memory_space<vmem>>, vector<2x32xf32>,
    return
  }
}

</mosaic_0001>

<llo_original>
// kernel: channel_attention_pallas.1
$region0: #{channel_attention_pallas.1}
  #allocation0 [shape = 'u32[]', space=smem, size = 0x4, offset = 0x4, fixed_abs, tag = 'smem constant byte address 0x4 - core index']
  #allocation1 [shape = 'u32[72,128]{1,0:T(1,128)}', space=vmem, size = 0x9000, scoped, tag = 'internal scratch']
  %s0 = inlined_call_operand.vmem [shape: f32[2,32,256], index: 0, kind: input, shape index: {}]
  %s1 = inlined_call_operand.vmem [shape: f32[2,32], index: 1, kind: input, shape index: {}]
  %s2 = inlined_call_operand.vmem [shape: f32[2,32], index: 2, kind: input, shape index: {}]
  %s3 = inlined_call_operand.hbm [shape: f32[2,32], index: 3, kind: output, shape index: {}]
  %s4 = sld [smem:[#allocation0]]
  $region22: #{channel_attention_pallas.1} parent=0
    _
  %s6 = ssub.s32 1, %s4
  %s7 = scalar_select 0, %s6, %s4
  $region1: #{channel_attention_pallas.1} parent=0
    #allocation2 [shape = 'u8[1024]{0}', space=vmem, size = 0x400, scoped, tag = 'output window, operand 0, single buffered']
    #allocation3 [shape = 's32[1]{0}', space=sflag, size = 0x4, scoped, tag = 'scoped memory for channel_attention_pallas.1']
    %8 = vsyncpa [#allocation3], 0
    // Predicated region
    $region2: #{channel_attention_pallas.1} parent=1 // pred_check
      _
    $region3: #{channel_attention_pallas.1} parent=1 // pred_check_branch
      %10 = sbr.rel (0) target = $region5
    $region4: #{channel_attention_pallas.1} parent=1 // pred_region
      _
    $region5: #{channel_attention_pallas.1} parent=1 // pred_fallthru
      _
    // Predicated region
    $region6: #{channel_attention_pallas.1} parent=1 // pred_check
      _
    $region7: #{channel_attention_pallas.1} parent=1 // pred_check_branch
      %12 = sbr.rel (0) target = $region9
    $region8: #{channel_attention_pallas.1} parent=1 // pred_region
      _
    $region9: #{channel_attention_pallas.1} parent=1 // pred_fallthru
      _
    // Predicated region
    $region10: #{channel_attention_pallas.1} parent=1 // pred_check
      _
    $region11: #{channel_attention_pallas.1} parent=1 // pred_check_branch
      %14 = sbr.rel (0) target = $region13
    $region12: #{channel_attention_pallas.1} parent=1 // pred_region
      _
    $region13: #{channel_attention_pallas.1} parent=1 // pred_fallthru
      _
    %v15 = vld [vmem:[%s0] sm:$0xff]
    %v16 = vld [vmem:[%s0 + $0x8] sm:$0xff]
    %v17 = vld [vmem:[%s0 + $0x10] sm:$0xff]
    %v18 = vld [vmem:[%s0 + $0x18] sm:$0xff]
    %v19 = vld [vmem:[%s0 + $0x20] sm:$0xff]
    %v20 = vld [vmem:[%s0 + $0x28] sm:$0xff]
    %v21 = vld [vmem:[%s0 + $0x30] sm:$0xff]
    %v22 = vld [vmem:[%s0 + $0x38] sm:$0xff]
    %v23 = vld [vmem:[%s0 + $0x40] sm:$0xff]
    %v24 = vld [vmem:[%s0 + $0x48] sm:$0xff]
    %v25 = vld [vmem:[%s0 + $0x50] sm:$0xff]
    %v26 = vld [vmem:[%s0 + $0x58] sm:$0xff]
    %v27 = vld [vmem:[%s0 + $0x60] sm:$0xff]
    %v28 = vld [vmem:[%s0 + $0x68] sm:$0xff]
    %v29 = vld [vmem:[%s0 + $0x70] sm:$0xff]
    %v30 = vld [vmem:[%s0 + $0x78] sm:$0xff]
    %v31 = vld [vmem:[%s1] sm:$0x3]
    %v32 = vld [vmem:[%s2] sm:$0x3]
    %v33 = vmax.f32 %v15, %v16
    %34 = vmax.xlane.f32.xlu0 %v33
    %v35 = vpop.xlane.xlu0 %34
    %v36 = vmax.f32 %v17, %v18
    %37 = vmax.xlane.f32.xlu0 %v36
    %v38 = vpop.xlane.xlu0 %37
    %v39 = vmax.f32 %v19, %v20
    %40 = vmax.xlane.f32.xlu0 %v39
    %v41 = vpop.xlane.xlu0 %40
    %v42 = vmax.f32 %v21, %v22
    %43 = vmax.xlane.f32.xlu0 %v42
    %v44 = vpop.xlane.xlu0 %43
    %v45 = vmax.f32 %v23, %v24
    %46 = vmax.xlane.f32.xlu0 %v45
    %v47 = vpop.xlane.xlu0 %46
    %v48 = vmax.f32 %v25, %v26
    %49 = vmax.xlane.f32.xlu0 %v48
    %v50 = vpop.xlane.xlu0 %49
    %v51 = vmax.f32 %v27, %v28
    %52 = vmax.xlane.f32.xlu0 %v51
    %v53 = vpop.xlane.xlu0 %52
    %v54 = vmax.f32 %v29, %v30
    %55 = vmax.xlane.f32.xlu0 %v54
    %v56 = vpop.xlane.xlu0 %55
    %v58 = vperm.slane %v31, 0
    %v59 = vlaneseq
    %v60 = vshrl.u32 %v59, 7
    %62 = vset.pattern.permute.xlu0 %v60
    %63 = vperm.xlu0 %62, %v58
    %v64 = vpop.permute.xlu0 %63
    %v65 = vlaneseq
    %v66 = vshrl.u32 %v65, 7
    %v67 = vadd.s32 %v66, 8
    %68 = vset.pattern.permute.xlu0 %v67
    %69 = vperm.xlu0 %68, %v58
    %v70 = vpop.permute.xlu0 %69
    %v71 = vlaneseq
    %v72 = vshrl.u32 %v71, 7
    %v73 = vadd.s32 %v72, 16
    %74 = vset.pattern.permute.xlu0 %v73
    %75 = vperm.xlu0 %74, %v58
    %v76 = vpop.permute.xlu0 %75
    %v77 = vlaneseq
    %v78 = vshrl.u32 %v77, 7
    %v79 = vadd.s32 %v78, 24
    %80 = vset.pattern.permute.xlu0 %v79
    %81 = vperm.xlu0 %80, %v58
    %v82 = vpop.permute.xlu0 %81
    %v83 = vperm.slane %v31, 1
    %v84 = vlaneseq
    %v85 = vshrl.u32 %v84, 7
    %87 = vset.pattern.permute.xlu0 %v85
    %88 = vperm.xlu0 %87, %v83
    %v89 = vpop.permute.xlu0 %88
    %v90 = vlaneseq
    %v91 = vshrl.u32 %v90, 7
    %v92 = vadd.s32 %v91, 8
    %93 = vset.pattern.permute.xlu0 %v92
    %94 = vperm.xlu0 %93, %v83
    %v95 = vpop.permute.xlu0 %94
    %v96 = vlaneseq
    %v97 = vshrl.u32 %v96, 7
    %v98 = vadd.s32 %v97, 16
    %99 = vset.pattern.permute.xlu0 %v98
    %100 = vperm.xlu0 %99, %v83
    %v101 = vpop.permute.xlu0 %100
    %v102 = vlaneseq
    %v103 = vshrl.u32 %v102, 7
    %v104 = vadd.s32 %v103, 24
    %105 = vset.pattern.permute.xlu0 %v104
    %106 = vperm.xlu0 %105, %v83
    %v107 = vpop.permute.xlu0 %106
    %v116 = vmul.f32 %v35, %v64
    %v117 = vmul.f32 %v38, %v70
    %v118 = vmul.f32 %v41, %v76
    %v119 = vmul.f32 %v44, %v82
    %v120 = vmul.f32 %v35, %v89
    %v121 = vmul.f32 %v38, %v95
    %v122 = vmul.f32 %v41, %v101
    %v123 = vmul.f32 %v44, %v107
    %v124 = vmul.f32 %v47, %v64
    %v125 = vmul.f32 %v50, %v70
    %v126 = vmul.f32 %v53, %v76
    %v127 = vmul.f32 %v56, %v82
    %v128 = vmul.f32 %v47, %v89
    %v129 = vmul.f32 %v50, %v95
    %v130 = vmul.f32 %v53, %v101
    %v131 = vmul.f32 %v56, %v107
    %148 = vset.pattern.permute.xlu0 0
    %149 = vperm.xlu0 %148, %v116
    %v150 = vpop.permute.xlu0 %149
    %151 = vset.pattern.permute.xlu0 0
    %152 = vperm.xlu0 %151, %v117
    %v153 = vpop.permute.xlu0 %152
    %154 = vset.pattern.permute.xlu0 0
    %155 = vperm.xlu0 %154, %v118
    %v156 = vpop.permute.xlu0 %155
    %157 = vset.pattern.permute.xlu0 0
    %158 = vperm.xlu0 %157, %v119
    %v159 = vpop.permute.xlu0 %158
    %160 = vset.pattern.permute.xlu0 0
    %161 = vperm.xlu0 %160, %v120
    %v162 = vpop.permute.xlu0 %161
    %163 = vset.pattern.permute.xlu0 0
    %164 = vperm.xlu0 %163, %v121
    %v165 = vpop.permute.xlu0 %164
    %166 = vset.pattern.permute.xlu0 0
    %167 = vperm.xlu0 %166, %v122
    %v168 = vpop.permute.xlu0 %167
    %169 = vset.pattern.permute.xlu0 0
    %170 = vperm.xlu0 %169, %v123
    %v171 = vpop.permute.xlu0 %170
    %172 = vset.pattern.permute.xlu0 0
    %173 = vperm.xlu0 %172, %v124
    %v174 = vpop.permute.xlu0 %173
    %175 = vset.pattern.permute.xlu0 0
    %176 = vperm.xlu0 %175, %v125
    %v177 = vpop.permute.xlu0 %176
    %178 = vset.pattern.permute.xlu0 0
    %179 = vperm.xlu0 %178, %v126
    %v180 = vpop.permute.xlu0 %179
    %181 = vset.pattern.permute.xlu0 0
    %182 = vperm.xlu0 %181, %v127
    %v183 = vpop.permute.xlu0 %182
    %184 = vset.pattern.permute.xlu0 0
    %185 = vperm.xlu0 %184, %v128
    %v186 = vpop.permute.xlu0 %185
    %187 = vset.pattern.permute.xlu0 0
    %188 = vperm.xlu0 %187, %v129
    %v189 = vpop.permute.xlu0 %188
    %190 = vset.pattern.permute.xlu0 0
    %191 = vperm.xlu0 %190, %v130
    %v192 = vpop.permute.xlu0 %191
    %193 = vset.pattern.permute.xlu0 0
    %194 = vperm.xlu0 %193, %v131
    %v195 = vpop.permute.xlu0 %194
    %v196 = vlaneseq
    %v197 = vand.u32 %v196, 127
    %v198 = vperm.slane %v150, %v197
    %v199 = vadd.s32 %v197, 4294967288
    %v200 = vperm.slane %v153, %v199
    %vm201 = vcmask 130112
    %v202 = vsel %vm201, %v200, %v198
    %v203 = vadd.s32 %v197, 4294967280
    %v204 = vperm.slane %v156, %v203
    %vm205 = vcmask 195712
    %v206 = vsel %vm205, %v204, %v202
    %v207 = vadd.s32 %v197, 4294967272
    %v208 = vperm.slane %v159, %v207
    %vm209 = vcmask 261312
    %v210 = vsel %vm209, %v208, %v206
    %v211 = vperm.slane %v162, %v197
    %v212 = vperm.slane %v165, %v199
    %v213 = vsel %vm201, %v212, %v211
    %v214 = vperm.slane %v168, %v203
    %v215 = vsel %vm205, %v214, %v213
    %v216 = vperm.slane %v171, %v207
    %v217 = vsel %vm209, %v216, %v215
    %v218 = vperm.slane %v174, %v197
    %v219 = vperm.slane %v177, %v199
    %v220 = vsel %vm201, %v219, %v218
    %v221 = vperm.slane %v180, %v203
    %v222 = vsel %vm205, %v221, %v220
    %v223 = vperm.slane %v183, %v207
    %v224 = vsel %vm209, %v223, %v222
    %v225 = vperm.slane %v186, %v197
    %v226 = vperm.slane %v189, %v199
    %v227 = vsel %vm201, %v226, %v225
    %v228 = vperm.slane %v192, %v203
    %v229 = vsel %vm205, %v228, %v227
    %v230 = vperm.slane %v195, %v207
    %v231 = vsel %vm209, %v230, %v229
    %vm232 = vcmask 1041409
    %v233 = vsel %vm232, %v217, %v210
    %v234 = vsel %vm232, %v231, %v224
    %vm237 = vcmask 254976
    %v238 = vsel %vm237, %v233, 0.0
    %239 = vadd.xlane.f32.xlu0 %v238
    %v240 = vpop.xlane.xlu0 %239
    %v241 = vsel %vm237, %v234, 0.0
    %242 = vadd.xlane.f32.xlu0 %v241
    %v243 = vpop.xlane.xlu0 %242
    %v244 = vmax.f32 %v240, 0.0
    %v245 = vmax.f32 %v243, 0.0
    %v246 = vmul.f32 %v244, %v32
    %v247 = vmul.f32 %v245, %v32
    %v248 = vsel %vm237, %v246, 0.0
    %v249 = vrot.slane %v248, 4
    %v250 = vadd.f32 %v248, %v249
    %v251 = vrot.slane %v250, 2
    %v252 = vadd.f32 %v250, %v251
    %v253 = vrot.slane %v252, 1
    %v254 = vadd.f32 %v252, %v253
    %v255 = vsel %vm237, %v247, 0.0
    %v256 = vrot.slane %v255, 4
    %v257 = vadd.f32 %v255, %v256
    %v258 = vrot.slane %v257, 2
    %v259 = vadd.f32 %v257, %v258
    %v260 = vrot.slane %v259, 1
    %v261 = vadd.f32 %v259, %v260
    %v262 = vxor.u32 %v254, 2147483648
    %v263 = vxor.u32 %v261, 2147483648
    %v264 = vmul.f32 %v262, 1.442695
    %v265 = vpow.pop %v264
    %v266 = vmul.f32 %v263, 1.442695
    %v267 = vpow.pop %v266
    %v268 = vadd.f32 %v265, 1.0
    %v269 = vadd.f32 %v267, 1.0
    %v270 = vrcp.pop %v268
    %v271 = vmul.f32 %v268, %v270
    %v272 = vsub.f32 1.0, %v271
    %v273 = vmul.f32 %v270, %v272
    %v274 = vadd.f32 %v270, %v273
    %vm275 = vweird.f32 %v268
    %vm276 = vweird.f32 %v270
    %vm277 = vmor %vm275, %vm276
    %v278 = vsel %vm277, %v270, %v274
    %v279 = vand.u32 2147483647, %v268
    %vm280 = vcmp.eq.f32.partialorder %v279, 8.507059e+37
    %v281 = vand.u32 %v268, 2147483648
    %v282 = vor.u32 1.1754944e-38, %v281
    %v283 = vsel %vm280, %v282, %v278
    %v284 = vmul.f32 1.0, %v283
    %v285 = vrcp.pop %v269
    %v286 = vmul.f32 %v269, %v285
    %v287 = vsub.f32 1.0, %v286
    %v288 = vmul.f32 %v285, %v287
    %v289 = vadd.f32 %v285, %v288
    %vm290 = vweird.f32 %v269
    %vm291 = vweird.f32 %v285
    %vm292 = vmor %vm290, %vm291
    %v293 = vsel %vm292, %v285, %v289
    %v294 = vand.u32 2147483647, %v269
    %vm295 = vcmp.eq.f32.partialorder %v294, 8.507059e+37
    %v296 = vand.u32 %v269, 2147483648
    %v297 = vor.u32 1.1754944e-38, %v296
    %v298 = vsel %vm295, %v297, %v293
    %v299 = vmul.f32 1.0, %v298
    %v302 = vsel %vm232, %v299, %v284
    %304 = vst.msk [vmem:[#allocation2] sm:$0x3] %vm237, %v302
    // Predicated region
    $region14: #{channel_attention_pallas.1} parent=1 // pred_check
      _
    $region15: #{channel_attention_pallas.1} parent=1 // pred_check_branch
      %306 = sbr.rel (0) target = $region17
    $region16: #{channel_attention_pallas.1} parent=1 // pred_region
      %308 = vsyncadd [#allocation3], 0
      %s310 = sshll.u32 [#allocation2], 4
      %s311 = int_to_ptr.vmem [resolvable:$true] %s310
      %s312 = sshll.u32 %s3, 4
      %s313 = int_to_ptr.hbm [resolvable:$true] %s312
      %315 = dma.vmem_to_hbm [thread:$0]  %s311, 32, %s313, [#allocation3]
    $region17: #{channel_attention_pallas.1} parent=1 // pred_fallthru
      _
    // Predicated region
    $region18: #{channel_attention_pallas.1} parent=1 // pred_check
      _
    $region19: #{channel_attention_pallas.1} parent=1 // pred_check_branch
      %317 = sbr.rel (0) target = $region21
    $region20: #{channel_attention_pallas.1} parent=1 // pred_region
      %319 = dma.done [#allocation3], 32
    $region21: #{channel_attention_pallas.1} parent=1 // pred_fallthru
      _
    %320 = vsyncpa [#allocation3], 1

</llo_original>
